<compile_context>
chip_gen: v5e
topology: v5e:2x2
jax: 0.10.0
libtpu: 0.0.40
codegen_flags: <defaults>
</compile_context>

<pallas_src>
import jax
import jax.numpy as jnp
from jax.experimental import pallas as pl
from jax.experimental.pallas import tpu as pltpu


def _make_fusion_kernel(n):
    """Kernel: out = sum_i w[i] * feat_i, weights already normalized in wrapper.

    w_ref        : SMEM scalar-prefetch ref, shape (n,), float32
    refs[0:n]    : VMEM feature tiles, each (TR, LANE)
    refs[n]      : VMEM output tile, (TR, LANE)
    """
    def kernel(w_ref, *refs):
        out_ref = refs[n]
        acc = refs[0][...].astype(jnp.float32) * w_ref[0]
        for i in range(1, n):
            acc = acc + refs[i][...].astype(jnp.float32) * w_ref[i]
        out_ref[...] = acc.astype(out_ref.dtype)
    return kernel


def _plan_tiling(total, n, itemsize):
    """Pick (lane_width, padded_rows, tile_rows) for the flattened slab."""
    # Widest lane dim in {1024,512,256,128} that divides the element count.
    lane = 128
    for cand in (1024, 512, 256):
        if total % cand == 0:
            lane = cand
            break
    rows = -(-total // lane)

    # Double-buffered footprint: 2 * (n inputs + 1 output) * tile bytes.
    # ~12 MiB fits the default scoped VMEM on v5e (16 MiB) and v6e/v7x (32 MiB).
    budget = 12 * (1 << 20)
    tr = budget // (2 * (n + 1) * lane * itemsize)
    tr = int(max(8, min(2048, (tr // 8) * 8)))
    if rows >= 4 * 256:
        # Keep >= 4 grid steps so both v7x TensorCores get work.
        tr = min(tr, max(256, (rows // 4) // 8 * 8))

    if rows <= tr:
        tile_rows = rows                      # single full-array block
    else:
        tile_rows = 0
        for t in range(tr, 7, -8):            # largest multiple-of-8 divisor
            if rows % t == 0:
                tile_rows = t
                break
        if tile_rows == 0:                    # ragged row count: pad rows up
            tile_rows = tr
            rows = -(-rows // tile_rows) * tile_rows
    return lane, rows, tile_rows


def feature_fusion(features, weight, *, mode="sum", normalize=True,
                   softmax=False, nonlinear=None):
    """Pallas implementation of FeatureFusion.forward (mode='sum').

    features : list of N arrays, each (B, C, H, W), same shape/dtype
    weight   : (N,) float32 trainable weights
    nonlinear: optional JAX callable applied to the weights
    """
    assert mode == "sum", "only 'sum' mode is implemented in-kernel"
    n = len(features)
    shape = features[0].shape
    dtype = features[0].dtype
    total = 1
    for d in shape:
        total *= d

    # Fold nonlinear / softmax / normalization into the weights (tiny N-elem op).
    w = weight.astype(jnp.float32)
    if nonlinear is not None:
        w = nonlinear(w)
    if softmax:
        w = jax.nn.softmax(w, axis=0)
    if normalize and not softmax:
        w = w / (w.sum() + jnp.float32(1e-4))
    w_eff = w

    lane, rows, tile_rows = _plan_tiling(total, n, jnp.dtype(dtype).itemsize)
    padded_total = rows * lane

    # Flatten each feature to a lane-dense (rows, lane) view. No stacking; the
    # contiguous reshape is free when no padding is required (the common case).
    flats = []
    for f in features:
        x = f.reshape(-1)
        if padded_total != total:
            x = jnp.pad(x, (0, padded_total - total))
        flats.append(x.reshape(rows, lane))

    grid = (rows // tile_rows,)
    kernel = _make_fusion_kernel(n)

    out2d = pl.pallas_call(
        kernel,
        out_shape=jax.ShapeDtypeStruct((rows, lane), dtype),
        grid_spec=pltpu.PrefetchScalarGridSpec(
            num_scalar_prefetch=1,
            grid=grid,
            in_specs=[pl.BlockSpec((tile_rows, lane), lambda i, wref: (i, 0))
                      for _ in range(n)],
            out_specs=pl.BlockSpec((tile_rows, lane), lambda i, wref: (i, 0)),
        ),
        compiler_params=pltpu.CompilerParams(
            dimension_semantics=("parallel",),
            vmem_limit_bytes=32 * (1 << 20),
        ),
    )(w_eff, *flats)

    out = out2d.reshape(-1)
    if padded_total != total:
        out = out[:total]
    return out.reshape(shape)


def feature_fusion_ref(features, weight, *, normalize=True, softmax=False,
                       nonlinear=None):
    """Pure-JAX reference mirroring the PyTorch forward (mode='sum')."""
    w = weight.astype(jnp.float32)
    if nonlinear is not None:
        w = nonlinear(w)
    if softmax:
        w = jax.nn.softmax(w, axis=0)
    fusion = jnp.zeros_like(features[0], dtype=jnp.float32)
    for i in range(len(features)):
        fusion = fusion + w[i] * features[i].astype(jnp.float32)
    if normalize and not softmax:
        fusion = fusion / (w.sum() + 1e-4)
    return fusion.astype(features[0].dtype)


if __name__ == "__main__":
    key = jax.random.PRNGKey(0)
    num = 3                      # number of feature maps to fuse
    B, C, H, W = 2, 4, 16, 16

    keys = jax.random.split(key, num)
    features = [jax.random.normal(k, (B, C, H, W), dtype=jnp.float32)
                for k in keys]

    # Module inits weights to ones; perturb deterministically so the weighted
    # sum is non-trivial.
    weight = jnp.ones((num,), jnp.float32) + 0.1 * jnp.arange(num, dtype=jnp.float32)

    # Default BiFPN path: weight=True, normalize=True, softmax=False.
    out = jax.block_until_ready(feature_fusion(features, weight))
    ref = feature_fusion_ref(features, weight)
    assert out.shape == (B, C, H, W)
    assert jnp.allclose(out, ref, atol=1e-5, rtol=1e-5), \
        f"default path max abs err {jnp.max(jnp.abs(out - ref))}"

    # Softmax path (normalize redundant per module docstring).
    out_sm = jax.block_until_ready(
        feature_fusion(features, weight, normalize=False, softmax=True))
    ref_sm = feature_fusion_ref(features, weight, normalize=False, softmax=True)
    assert jnp.allclose(out_sm, ref_sm, atol=1e-5, rtol=1e-5), \
        f"softmax path max abs err {jnp.max(jnp.abs(out_sm - ref_sm))}"

    # normalize=False path (plain weighted sum).
    out_nn = jax.block_until_ready(
        feature_fusion(features, weight, normalize=False))
    ref_nn = feature_fusion_ref(features, weight, normalize=False)
    assert jnp.allclose(out_nn, ref_nn, atol=1e-5, rtol=1e-5), \
        f"no-normalize path max abs err {jnp.max(jnp.abs(out_nn - ref_nn))}"

    print("KERNEL_OK")
</pallas_src>

<mosaic_0001>
module attributes {stable_mosaic.version = 11 : i64} {
  func.func @kernel(%arg0: i32, %arg1: memref<3xf32, #tpu.memory_space<smem>>, %arg2: memref<2x1024xf32, #tpu.memory_space<vmem>>, %arg3: memref<2x1024xf32, #tpu.memory_space<vmem>>, %arg4: memref<2x1024xf32, #tpu.memory_space<vmem>>, %arg5: memref<2x1024xf32, #tpu.memory_space<vmem>>) attributes {dimension_semantics = [#tpu.dimension_semantics<parallel>], iteration_bounds = array<i64: 1>, scalar_prefetch = 1 : i64, scratch_operands = 0 : i64, tpu.core_type = #tpu.core_type<tc>, window_params = [{transform_indices = @transform_0, window_bounds = array<i64: 2, 1024>}, {transform_indices = @transform_1, window_bounds = array<i64: 2, 1024>}, {transform_indices = @transform_2, window_bounds = array<i64: 2, 1024>}, {transform_indices = @transform_3, window_bounds = array<i64: 2, 1024>}]} {
    %c0 = arith.constant 0 : index
    %c0_0 = arith.constant 0 : index
    %0 = vector.load %arg2[%c0, %c0_0] : memref<2x1024xf32, #tpu.memory_space<vmem>>, vector<2x1024xf32>
    %c0_1 = arith.constant 0 : index
    %1 = memref.load %arg1[%c0_1] : memref<3xf32, #tpu.memory_space<smem>>
    %2 = vector.broadcast %1 : f32 to vector<2x1024xf32>
    %3 = arith.mulf %0, %2 : vector<2x1024xf32>
    %c0_2 = arith.constant 0 : index
    %c0_3 = arith.constant 0 : index
    %4 = vector.load %arg3[%c0_2, %c0_3] : memref<2x1024xf32, #tpu.memory_space<vmem>>, vector<2x1024xf32>
    %c1 = arith.constant 1 : index
    %5 = memref.load %arg1[%c1] : memref<3xf32, #tpu.memory_space<smem>>
    %6 = vector.broadcast %5 : f32 to vector<2x1024xf32>
    %7 = arith.mulf %4, %6 : vector<2x1024xf32>
    %8 = arith.addf %3, %7 : vector<2x1024xf32>
    %c0_4 = arith.constant 0 : index
    %c0_5 = arith.constant 0 : index
    %9 = vector.load %arg4[%c0_4, %c0_5] : memref<2x1024xf32, #tpu.memory_space<vmem>>, vector<2x1024xf32>
    %c2 = arith.constant 2 : index
    %10 = memref.load %arg1[%c2] : memref<3xf32, #tpu.memory_space<smem>>
    %11 = vector.broadcast %10 : f32 to vector<2x1024xf32>
    %12 = arith.mulf %9, %11 : vector<2x1024xf32>
    %13 = arith.addf %8, %12 : vector<2x1024xf32>
    %c0_6 = arith.constant 0 : index
    %c0_7 = arith.constant 0 : index
    %14 = vector.load %arg5[%c0_6, %c0_7] : memref<2x1024xf32, #tpu.memory_space<vmem>>, vector<2x1024xf32>
    tpu.vector_store %arg5[%c0_6, %c0_7], %13 {strides = array<i32>} : memref<2x1024xf32, #tpu.memory_space<vmem>>, vector<2x1024xf32>,
    return
  }
  func.func @transform_0(%arg0: i32, %arg1: memref<3xf32, #tpu.memory_space<smem>>) -> (i32, i32) {
    %c0_i32 = arith.constant 0 : i32
    %c0_i32_0 = arith.constant 0 : i32
    return %arg0, %c0_i32 : i32, i32
  }
  func.func @transform_1(%arg0: i32, %arg1: memref<3xf32, #tpu.memory_space<smem>>) -> (i32, i32) {
    %c0_i32 = arith.constant 0 : i32
    %c0_i32_0 = arith.constant 0 : i32
    return %arg0, %c0_i32 : i32, i32
  }
  func.func @transform_2(%arg0: i32, %arg1: memref<3xf32, #tpu.memory_space<smem>>) -> (i32, i32) {
    %c0_i32 = arith.constant 0 : i32
    %c0_i32_0 = arith.constant 0 : i32
    return %arg0, %c0_i32 : i32, i32
  }
  func.func @transform_3(%arg0: i32, %arg1: memref<3xf32, #tpu.memory_space<smem>>) -> (i32, i32) {
    %c0_i32 = arith.constant 0 : i32
    %c0_i32_0 = arith.constant 0 : i32
    return %arg0, %c0_i32 : i32, i32
  }
}

</mosaic_0001>

<llo_original>
// kernel: tpu_custom_call.1
$region0: #{tpu_custom_call.1}
  #allocation0 [shape = 'u32[]', space=smem, size = 0x4, offset = 0x4, fixed_abs, tag = 'smem constant byte address 0x4 - core index']
  #allocation1 [shape = 'u32[72,128]{1,0:T(1,128)}', space=vmem, size = 0x9000, scoped, tag = 'internal scratch']
  #allocation2 [shape = 's32[1]{0}', space=sflag, size = 0x4, scoped, tag = 'scoped memory for tpu_custom_call.1']
  #allocation3 [shape = 'u8[512]{0}', space=smem, size = 0x200, scoped, tag = 'prefetched SMEM operand 0']
  %s0 = inlined_call_operand.hbm [shape: f32[3], index: 0, kind: input, shape index: {}]
  %s1 = inlined_call_operand.hbm [shape: f32[2,1024], index: 1, kind: input, shape index: {}]
  %s2 = inlined_call_operand.hbm [shape: f32[2,1024], index: 2, kind: input, shape index: {}]
  %s3 = inlined_call_operand.hbm [shape: f32[2,1024], index: 3, kind: input, shape index: {}]
  %s4 = inlined_call_operand.hbm [shape: f32[2,1024], index: 4, kind: output, shape index: {}]
  %s5 = sld [smem:[#allocation0]]
  $region34: #{tpu_custom_call.1} parent=0
    _
  %s7 = ssub.s32 1, %s5
  %s8 = scalar_select 0, %s7, %s5
  %s10 = sshll.u32 %s0, 4
  %s11 = int_to_ptr.hbm [resolvable:$true] %s10
  %13 = dma.hbm_to_smem %s11, 16, [#allocation3], [#allocation2]
  %15 = dma.done [#allocation2], 16
  %16 = sfence
  $region1: #{tpu_custom_call.1} parent=0
    #allocation4 [shape = 'u8[8192]{0}', space=vmem, size = 0x2000, scoped, tag = 'input window, operand 1, single buffered']
    #allocation5 [shape = 's32[1]{0}', space=sflag, size = 0x4, scoped, tag = 'scoped memory for tpu_custom_call.1']
    #allocation6 [shape = 's32[1]{0}', space=sflag, size = 0x4, scoped, tag = 'scoped memory for tpu_custom_call.1']
    #allocation7 [shape = 'u8[8192]{0}', space=vmem, size = 0x2000, scoped, tag = 'input window, operand 2, single buffered']
    #allocation8 [shape = 's32[1]{0}', space=sflag, size = 0x4, scoped, tag = 'scoped memory for tpu_custom_call.1']
    #allocation9 [shape = 'u8[8192]{0}', space=vmem, size = 0x2000, scoped, tag = 'input window, operand 3, single buffered']
    #allocation10 [shape = 'u8[8192]{0}', space=vmem, size = 0x2000, scoped, tag = 'output window, operand 0, single buffered']
    %17 = vsyncpa [#allocation5], 0
    %18 = vsyncpa [#allocation8], 0
    %19 = vsyncpa [#allocation6], 0
    // Predicated region
    $region2: #{tpu_custom_call.1} parent=1 // pred_check
      _
    $region3: #{tpu_custom_call.1} parent=1 // pred_check_branch
      %21 = sbr.rel (0) target = $region5
    $region4: #{tpu_custom_call.1} parent=1 // pred_region
      %23 = vsyncadd [#allocation5], 0
      %s25 = sshll.u32 %s1, 4
      %s26 = int_to_ptr.hbm [resolvable:$true] %s25
      %s27 = sshll.u32 [#allocation4], 4
      %s28 = int_to_ptr.vmem [resolvable:$true] %s27
      %30 = dma.hbm_to_vmem [thread:$0]  %s26, 256, %s28, [#allocation5]
    $region5: #{tpu_custom_call.1} parent=1 // pred_fallthru
      _
    // Predicated region
    $region6: #{tpu_custom_call.1} parent=1 // pred_check
      _
    $region7: #{tpu_custom_call.1} parent=1 // pred_check_branch
      %32 = sbr.rel (0) target = $region9
    $region8: #{tpu_custom_call.1} parent=1 // pred_region
      %34 = vsyncadd [#allocation8], 0
      %s36 = sshll.u32 %s2, 4
      %s37 = int_to_ptr.hbm [resolvable:$true] %s36
      %s38 = sshll.u32 [#allocation7], 4
      %s39 = int_to_ptr.vmem [resolvable:$true] %s38
      %41 = dma.hbm_to_vmem [thread:$0]  %s37, 256, %s39, [#allocation8]
    $region9: #{tpu_custom_call.1} parent=1 // pred_fallthru
      _
    // Predicated region
    $region10: #{tpu_custom_call.1} parent=1 // pred_check
      _
    $region11: #{tpu_custom_call.1} parent=1 // pred_check_branch
      %43 = sbr.rel (0) target = $region13
    $region12: #{tpu_custom_call.1} parent=1 // pred_region
      %45 = vsyncadd [#allocation8], 0
      %s47 = sshll.u32 %s3, 4
      %s48 = int_to_ptr.hbm [resolvable:$true] %s47
      %s49 = sshll.u32 [#allocation9], 4
      %s50 = int_to_ptr.vmem [resolvable:$true] %s49
      %52 = dma.hbm_to_vmem [thread:$0]  %s48, 256, %s50, [#allocation8]
    $region13: #{tpu_custom_call.1} parent=1 // pred_fallthru
      _
    // Predicated region
    $region14: #{tpu_custom_call.1} parent=1 // pred_check
      _
    $region15: #{tpu_custom_call.1} parent=1 // pred_check_branch
      %54 = sbr.rel (0) target = $region17
    $region16: #{tpu_custom_call.1} parent=1 // pred_region
      %56 = dma.done [#allocation5], 256
    $region17: #{tpu_custom_call.1} parent=1 // pred_fallthru
      _
    // Predicated region
    $region18: #{tpu_custom_call.1} parent=1 // pred_check
      _
    $region19: #{tpu_custom_call.1} parent=1 // pred_check_branch
      %58 = sbr.rel (0) target = $region21
    $region20: #{tpu_custom_call.1} parent=1 // pred_region
      %60 = dma.done [#allocation8], 256
    $region21: #{tpu_custom_call.1} parent=1 // pred_fallthru
      _
    // Predicated region
    $region22: #{tpu_custom_call.1} parent=1 // pred_check
      _
    $region23: #{tpu_custom_call.1} parent=1 // pred_check_branch
      %62 = sbr.rel (0) target = $region25
    $region24: #{tpu_custom_call.1} parent=1 // pred_region
      %64 = dma.done [#allocation8], 256
    $region25: #{tpu_custom_call.1} parent=1 // pred_fallthru
      _
    %v65 = vld [vmem:[#allocation4] sm:$0xff]
    %v66 = vld [vmem:[#allocation4 + $0x8] sm:$0xff]
    %s67 = sld [smem:[#allocation3]]
    %v68 = vstv %s67
    %v69 = vmul.f32 %v65, %v68
    %v70 = vmul.f32 %v66, %v68
    %v71 = vld [vmem:[#allocation7] sm:$0xff]
    %v72 = vld [vmem:[#allocation7 + $0x8] sm:$0xff]
    %s73 = sld [smem:[#allocation3 + $0x1]]
    %v74 = vstv %s73
    %v75 = vmul.f32 %v71, %v74
    %v76 = vmul.f32 %v72, %v74
    %v77 = vadd.f32 %v69, %v75
    %v78 = vadd.f32 %v70, %v76
    %v79 = vld [vmem:[#allocation9] sm:$0xff]
    %v80 = vld [vmem:[#allocation9 + $0x8] sm:$0xff]
    %s81 = sld [smem:[#allocation3 + $0x2]]
    %v82 = vstv %s81
    %v83 = vmul.f32 %v79, %v82
    %v84 = vmul.f32 %v80, %v82
    %v85 = vadd.f32 %v77, %v83
    %v86 = vadd.f32 %v78, %v84
    %87 = vst [vmem:[#allocation10] sm:$0xff] %v85
    %88 = vst [vmem:[#allocation10 + $0x8] sm:$0xff] %v86
    // Predicated region
    $region26: #{tpu_custom_call.1} parent=1 // pred_check
      _
    $region27: #{tpu_custom_call.1} parent=1 // pred_check_branch
      %90 = sbr.rel (0) target = $region29
    $region28: #{tpu_custom_call.1} parent=1 // pred_region
      %92 = vsyncadd [#allocation6], 0
      %s94 = sshll.u32 [#allocation10], 4
      %s95 = int_to_ptr.vmem [resolvable:$true] %s94
      %s96 = sshll.u32 %s4, 4
      %s97 = int_to_ptr.hbm [resolvable:$true] %s96
      %99 = dma.vmem_to_hbm [thread:$0]  %s95, 256, %s97, [#allocation6]
    $region29: #{tpu_custom_call.1} parent=1 // pred_fallthru
      _
    // Predicated region
    $region30: #{tpu_custom_call.1} parent=1 // pred_check
      _
    $region31: #{tpu_custom_call.1} parent=1 // pred_check_branch
      %101 = sbr.rel (0) target = $region33
    $region32: #{tpu_custom_call.1} parent=1 // pred_region
      %103 = dma.done [#allocation6], 256
    $region33: #{tpu_custom_call.1} parent=1 // pred_fallthru
      _
    %104 = vsyncpa [#allocation5], 1
    %105 = vsyncpa [#allocation8], 1
    %106 = vsyncpa [#allocation6], 1

</llo_original>
